<compile_context>
chip_gen: v5e
topology: v5e:2x2
jax: 0.10.0
libtpu: 0.0.40
codegen_flags: <defaults>
</compile_context>

<pallas_src>
import jax
import jax.numpy as jnp
from jax import lax
from jax.experimental import pallas as pl
from jax.experimental.pallas import tpu as pltpu


def _round_up(v: int, m: int) -> int:
    return (v + m - 1) // m * m


def _physical_vmem_bytes() -> int:
    """Physical per-core VMEM; conservative (v7x, 64 MiB) fallback if unqueryable."""
    try:
        info = pltpu.get_tpu_info()
        v = int(getattr(info, "vmem_capacity_bytes", 0) or 0)
        if v > 0:
            return v
    except Exception:
        pass
    return 64 << 20


def _is_v5e() -> bool:
    try:
        kind = jax.devices()[0].device_kind.lower()
    except Exception:
        return False
    return ("v5e" in kind) or ("v5 lite" in kind) or ("v5lite" in kind)


def _pick_cout_tile(np_pad: int) -> int:
    # v5e's MXU is 4x(128x128): a 256-wide N tile only inflates VMEM and the store
    # tail there; v6e / v7x (2x(256x256)) prefer N = 256 when it divides.
    if np_pad % 256 == 0 and not _is_v5e():
        return 256
    return 128


def _pick_row_tile(h: int, wq: int, kp: int, t_cout: int, elt: int,
                   budget_bytes: int) -> int:
    """Largest row tile (by repeated halving) whose VMEM footprint fits the budget."""
    def tile_bytes(ht: int) -> int:
        lx = (ht + 2) * wq
        lt = ht * wq
        return (3 * lx * kp * elt            # x slab (up to triple-buffered)
                + 2 * 3 * kp * t_cout * elt  # weight taps (double-buffered)
                + 2 * lt * t_cout * elt      # output blocks (double-buffered)
                + 3 * lt * t_cout * 4)       # f32 accumulator + dot temporaries
    ht = max(1, h)
    while ht > 1 and tile_bytes(ht) > budget_bytes:
        ht = (ht + 1) // 2
    # TODO(synk): add a column (W) tiling fallback for images so wide that even a
    #             one-row tile exceeds the VMEM budget.
    return ht


def _x_block_spec(shape, index_map, multi_buffer: bool):
    # 3-deep buffering on the streamed x row blocks hides HBM latency once the
    # per-tile compute shrinks; fall back cleanly if this JAX build lacks it.
    if multi_buffer and hasattr(pl, "Buffered"):
        try:
            return pl.BlockSpec(shape, index_map, pipeline_mode=pl.Buffered(3))
        except TypeError:
            pass
    return pl.BlockSpec(shape, index_map)


def _make_kernel(lt: int, wq: int):
    def kernel(x_ref, w_ref, b_ref, o_ref, acc_ref):
        # x_ref:   (1, 1, (Ht+2)*Wq, Kp)  dx-folded, halo'd row tile
        # w_ref:   (3, Kp, TC)            per-dy weight slabs, K = 3*Cin (dx folded)
        # b_ref:   (1, TC)                f32 bias
        # o_ref:   (1, Ht*Wq, TC)
        # acc_ref: (Ht*Wq, TC) f32        scratch accumulator (MRB-friendly += chain)
        # dy taps live at sublane-aligned static offsets 0, Wq, 2*Wq (Wq % 8 == 0).
        acc_ref[...] = jnp.dot(x_ref[0, 0, pl.ds(0, lt), :], w_ref[0],
                               preferred_element_type=jnp.float32)
        acc_ref[...] += jnp.dot(x_ref[0, 0, pl.ds(wq, lt), :], w_ref[1],
                                preferred_element_type=jnp.float32)
        acc_ref[...] += jnp.dot(x_ref[0, 0, pl.ds(2 * wq, lt), :], w_ref[2],
                                preferred_element_type=jnp.float32)
        out = acc_ref[...] + b_ref[...]                        # bias (f32)
        o_ref[0] = jnp.maximum(out, 0.0).astype(o_ref.dtype)   # ReLU + cast at store
    return kernel


def conv_block_hr_forward(x: jax.Array, weight: jax.Array, bias: jax.Array,
                          *, row_tile=None, channels_last_out=False) -> jax.Array:
    """ConvBlock_HR forward.

    x:      (b, Cin, H, W)    NCHW, f32 or bf16
    weight: (Cout, Cin, 3, 3) PyTorch Conv2d weight (cross-correlation)
    bias:   (Cout,)
    returns (b, Cout, H, W)   (or (b, H, W, Cout) if channels_last_out)
    """
    b, cin, H, W = x.shape
    cout, cin_w, kh, kw = weight.shape
    assert (kh, kw) == (3, 3) and cin_w == cin

    # ---- layout constants ----
    Wq = _round_up(W, 8)                    # working row width (sublane aligned)
    K = 3 * cin                             # dx-folded contraction depth
    # Lane-dense K when already MXU-sized; for tiny Cin keep K lean (the block's
    # last dim equals the full array dim so the (8,128) rule is satisfied, and
    # padding a tiny K to 128 would multiply x HBM traffic by >10x).
    Kp = _round_up(K, 128) if K >= 128 else _round_up(K, 8)
    Np = _round_up(cout, 128)               # lane-dense output channels
    t_cout = _pick_cout_tile(Np)
    n_j = Np // t_cout

    elt = jnp.dtype(x.dtype).itemsize
    phys_vmem = _physical_vmem_bytes()
    budget = min(int(phys_vmem * 0.45), 48 << 20)
    Ht = (_pick_row_tile(H, Wq, Kp, t_cout, elt, budget) if row_tile is None
          else max(1, min(int(row_tile), H)))
    n_t = -(-H // Ht)
    Hpad = n_t * Ht
    Lt = Ht * Wq                            # output rows per grid step
    Lx = (Ht + 2) * Wq                      # input rows per grid step (2-row dy halo)

    # ---- wrapper-side layout plumbing (XLA) ----
    x_cl = jnp.transpose(x, (0, 2, 3, 1))                      # (b, H, W, Cin)
    xp = jnp.pad(x_cl, ((0, 0), (1, 1), (1, 1), (0, 0)))       # zero 'same' padding
    # dx-fold: channel block dx holds xp[:, :, x+dx, :]   ->   (b, H+2, W, 3*Cin)
    x3 = jnp.concatenate(
        [xp[:, :, 0:W, :], xp[:, :, 1:W + 1, :], xp[:, :, 2:W + 2, :]], axis=-1)
    x3 = jnp.pad(x3, ((0, 0), (0, Hpad - H), (0, Wq - W), (0, Kp - K)))
    # halo'd row tiles: tile t covers image rows [t*Ht, t*Ht + Ht + 2)
    row_idx = jnp.arange(n_t)[:, None] * Ht + jnp.arange(Ht + 2)[None, :]
    x_tiles = jnp.take(x3, row_idx, axis=1)                    # (b, n_t, Ht+2, Wq, Kp)
    x_tiles = x_tiles.reshape(b, n_t, Lx, Kp)

    # weights: (Cout, Cin, 3, 3) -> (dy, dx, Cin, Cout) -> (3, 3*Cin, Cout);
    # the K index dx*Cin + ci matches the dx-fold concat order above.
    w_t = jnp.transpose(weight, (2, 3, 1, 0)).reshape(3, K, cout)
    w_t = jnp.pad(w_t, ((0, 0), (0, Kp - K), (0, Np - cout))).astype(x.dtype)
    bias_p = jnp.pad(bias, (0, Np - cout)).reshape(1, Np).astype(jnp.float32)

    kernel = _make_kernel(Lt, Wq)
    multi_buffer = n_t >= 3

    # Explicit scoped-VMEM budget, clamped to the chip's physical VMEM (v7x: 64 MiB).
    x_buf_n = 3 if multi_buffer else 2
    vmem_need = (x_buf_n * Lx * Kp * elt
                 + 2 * 3 * Kp * t_cout * elt
                 + 2 * Lt * t_cout * elt
                 + 3 * Lt * t_cout * 4
                 + (2 << 20))
    vmem_limit = int(min(max(vmem_need * 3 // 2, 32 << 20), phys_vmem * 3 // 4))

    out_flat = pl.pallas_call(
        kernel,
        out_shape=jax.ShapeDtypeStruct((b, Hpad * Wq, Np), x.dtype),
        grid_spec=pltpu.PrefetchScalarGridSpec(
            num_scalar_prefetch=0,
            grid=(b, n_j, n_t),             # spatial innermost: weights stay resident
            in_specs=[
                _x_block_spec((1, 1, Lx, Kp), lambda bi, j, t: (bi, t, 0, 0),
                              multi_buffer),
                pl.BlockSpec((3, Kp, t_cout), lambda bi, j, t: (0, 0, j)),
                pl.BlockSpec((1, t_cout), lambda bi, j, t: (0, j)),
            ],
            out_specs=pl.BlockSpec((1, Lt, t_cout), lambda bi, j, t: (bi, t, j)),
            scratch_shapes=[pltpu.VMEM((Lt, t_cout), jnp.float32)],
        ),
        compiler_params=pltpu.CompilerParams(
            dimension_semantics=("parallel", "parallel", "parallel"),
            vmem_limit_bytes=vmem_limit,
        ),
    )(x_tiles, w_t, bias_p)

    out = out_flat.reshape(b, Hpad, Wq, Np)[:, :H, :W, :cout]
    if channels_last_out:
        return out                           # NHWC: skip the NCHW round trip
    # TODO(synk): let NHWC consumers take the channels-last output directly and fuse
    #             this transpose into the consumer instead of a standalone HBM pass.
    return jnp.transpose(out, (0, 3, 1, 2))


def conv_block_hr_reference(x, weight, bias):
    """Pure-JAX reference matching the PyTorch forward (high-precision conv)."""
    out = lax.conv_general_dilated(
        x, weight, window_strides=(1, 1), padding=((1, 1), (1, 1)),
        dimension_numbers=("NCHW", "OIHW", "NCHW"),
        precision=lax.Precision.HIGHEST)
    out = out + bias[None, :, None, None]
    return jnp.maximum(out, 0.0)


if __name__ == "__main__":
    key = jax.random.PRNGKey(0)
    kx, kw, kb = jax.random.split(key, 3)

    # Primary small test shape.
    b, cin, cout, H, W = 2, 4, 8, 16, 16
    x = jax.random.normal(kx, (b, cin, H, W), dtype=jnp.float32)
    weight = jax.random.normal(kw, (cout, cin, 3, 3), dtype=jnp.float32) * 0.2
    bias = jax.random.normal(kb, (cout,), dtype=jnp.float32) * 0.1

    out = jax.block_until_ready(conv_block_hr_forward(x, weight, bias))
    ref = conv_block_hr_reference(x, weight, bias)
    assert out.shape == (b, cout, H, W)
    assert jnp.allclose(out, ref, atol=1e-2, rtol=1e-2), float(jnp.max(jnp.abs(out - ref)))

    # Second config: exercises row tiling + halo, H/W not multiples of the tile/8,
    # Cin/Cout padding, and the deeper-buffered streamed-x path.
    k2x, k2w, k2b = jax.random.split(jax.random.PRNGKey(0), 3)
    b2, cin2, cout2, H2, W2 = 1, 3, 10, 13, 9
    x2 = jax.random.normal(k2x, (b2, cin2, H2, W2), dtype=jnp.float32)
    w2 = jax.random.normal(k2w, (cout2, cin2, 3, 3), dtype=jnp.float32) * 0.2
    bi2 = jax.random.normal(k2b, (cout2,), dtype=jnp.float32) * 0.1
    out2 = jax.block_until_ready(conv_block_hr_forward(x2, w2, bi2, row_tile=4))
    ref2 = conv_block_hr_reference(x2, w2, bi2)
    assert out2.shape == (b2, cout2, H2, W2)
    assert jnp.allclose(out2, ref2, atol=1e-2, rtol=1e-2), float(jnp.max(jnp.abs(out2 - ref2)))

    print("KERNEL_OK")
</pallas_src>

<mosaic_0001>
module attributes {stable_mosaic.version = 11 : i64} {
  func.func @kernel(%arg0: i32, %arg1: i32, %arg2: i32, %arg3: memref<1x1x288x16xf32, #tpu.memory_space<vmem>>, %arg4: memref<3x16x128xf32, #tpu.memory_space<vmem>>, %arg5: memref<1x128xf32, #tpu.memory_space<vmem>>, %arg6: memref<1x256x128xf32, #tpu.memory_space<vmem>>, %arg7: memref<256x128xf32, #tpu.memory_space<vmem>>) attributes {dimension_semantics = [#tpu.dimension_semantics<parallel>, #tpu.dimension_semantics<parallel>, #tpu.dimension_semantics<parallel>], iteration_bounds = array<i64: 2, 1, 1>, scalar_prefetch = 0 : i64, scratch_operands = 1 : i64, tpu.core_type = #tpu.core_type<tc>, window_params = [{transform_indices = @transform_0, window_bounds = array<i64: 1, 1, 288, 16>}, {transform_indices = @transform_1, window_bounds = array<i64: 3, 16, 128>}, {transform_indices = @transform_2, window_bounds = array<i64: 1, 128>}, {transform_indices = @transform_3, window_bounds = array<i64: 1, 256, 128>}]} {
    %c0 = arith.constant 0 : index
    %c0_0 = arith.constant 0 : index
    %c0_1 = arith.constant 0 : index
    %c0_2 = arith.constant 0 : index
    %0 = vector.load %arg3[%c0, %c0_0, %c0_1, %c0_2] : memref<1x1x288x16xf32, #tpu.memory_space<vmem>>, vector<1x1x256x16xf32>
    %1 = vector.shape_cast %0 : vector<1x1x256x16xf32> to vector<256x16xf32>
    %c0_3 = arith.constant 0 : index
    %c0_4 = arith.constant 0 : index
    %c0_5 = arith.constant 0 : index
    %2 = vector.load %arg4[%c0_3, %c0_4, %c0_5] : memref<3x16x128xf32, #tpu.memory_space<vmem>>, vector<1x16x128xf32>
    %3 = vector.shape_cast %2 : vector<1x16x128xf32> to vector<16x128xf32>
    %cst = arith.constant dense<0.000000e+00> : vector<256x128xf32>
    %4 = tpu.matmul %1, %3, %cst {dimension_numbers = #tpu.dot_dimension_numbers<[1], [0], [0], [1], [0, 0, 1, 1], [], []>} : vector<256x16xf32>, vector<16x128xf32>, vector<256x128xf32> -> vector<256x128xf32>
    %c0_6 = arith.constant 0 : index
    %c0_7 = arith.constant 0 : index
    %5 = vector.load %arg7[%c0_6, %c0_7] : memref<256x128xf32, #tpu.memory_space<vmem>>, vector<256x128xf32>
    tpu.vector_store %arg7[%c0_6, %c0_7], %4 {strides = array<i32>} : memref<256x128xf32, #tpu.memory_space<vmem>>, vector<256x128xf32>,
    %c0_8 = arith.constant 0 : index
    %c0_9 = arith.constant 0 : index
    %6 = vector.load %arg7[%c0_8, %c0_9] : memref<256x128xf32, #tpu.memory_space<vmem>>, vector<256x128xf32>
    %c0_10 = arith.constant 0 : index
    %c0_11 = arith.constant 0 : index
    %c16 = arith.constant 16 : index
    %c0_12 = arith.constant 0 : index
    %7 = vector.load %arg3[%c0_10, %c0_11, %c16, %c0_12] : memref<1x1x288x16xf32, #tpu.memory_space<vmem>>, vector<1x1x256x16xf32>
    %8 = vector.shape_cast %7 : vector<1x1x256x16xf32> to vector<256x16xf32>
    %c1 = arith.constant 1 : index
    %c0_13 = arith.constant 0 : index
    %c0_14 = arith.constant 0 : index
    %9 = vector.load %arg4[%c1, %c0_13, %c0_14] : memref<3x16x128xf32, #tpu.memory_space<vmem>>, vector<1x16x128xf32>
    %10 = vector.shape_cast %9 : vector<1x16x128xf32> to vector<16x128xf32>
    %cst_15 = arith.constant dense<0.000000e+00> : vector<256x128xf32>
    %11 = tpu.matmul %8, %10, %cst_15 {dimension_numbers = #tpu.dot_dimension_numbers<[1], [0], [0], [1], [0, 0, 1, 1], [], []>} : vector<256x16xf32>, vector<16x128xf32>, vector<256x128xf32> -> vector<256x128xf32>
    %12 = arith.addf %6, %11 : vector<256x128xf32>
    %c0_16 = arith.constant 0 : index
    %c0_17 = arith.constant 0 : index
    %13 = vector.load %arg7[%c0_16, %c0_17] : memref<256x128xf32, #tpu.memory_space<vmem>>, vector<256x128xf32>
    tpu.vector_store %arg7[%c0_16, %c0_17], %12 {strides = array<i32>} : memref<256x128xf32, #tpu.memory_space<vmem>>, vector<256x128xf32>,
    %c0_18 = arith.constant 0 : index
    %c0_19 = arith.constant 0 : index
    %14 = vector.load %arg7[%c0_18, %c0_19] : memref<256x128xf32, #tpu.memory_space<vmem>>, vector<256x128xf32>
    %c0_20 = arith.constant 0 : index
    %c0_21 = arith.constant 0 : index
    %c32 = arith.constant 32 : index
    %c0_22 = arith.constant 0 : index
    %15 = vector.load %arg3[%c0_20, %c0_21, %c32, %c0_22] : memref<1x1x288x16xf32, #tpu.memory_space<vmem>>, vector<1x1x256x16xf32>
    %16 = vector.shape_cast %15 : vector<1x1x256x16xf32> to vector<256x16xf32>
    %c2 = arith.constant 2 : index
    %c0_23 = arith.constant 0 : index
    %c0_24 = arith.constant 0 : index
    %17 = vector.load %arg4[%c2, %c0_23, %c0_24] : memref<3x16x128xf32, #tpu.memory_space<vmem>>, vector<1x16x128xf32>
    %18 = vector.shape_cast %17 : vector<1x16x128xf32> to vector<16x128xf32>
    %cst_25 = arith.constant dense<0.000000e+00> : vector<256x128xf32>
    %19 = tpu.matmul %16, %18, %cst_25 {dimension_numbers = #tpu.dot_dimension_numbers<[1], [0], [0], [1], [0, 0, 1, 1], [], []>} : vector<256x16xf32>, vector<16x128xf32>, vector<256x128xf32> -> vector<256x128xf32>
    %20 = arith.addf %14, %19 : vector<256x128xf32>
    %c0_26 = arith.constant 0 : index
    %c0_27 = arith.constant 0 : index
    %21 = vector.load %arg7[%c0_26, %c0_27] : memref<256x128xf32, #tpu.memory_space<vmem>>, vector<256x128xf32>
    tpu.vector_store %arg7[%c0_26, %c0_27], %20 {strides = array<i32>} : memref<256x128xf32, #tpu.memory_space<vmem>>, vector<256x128xf32>,
    %c0_28 = arith.constant 0 : index
    %c0_29 = arith.constant 0 : index
    %22 = vector.load %arg7[%c0_28, %c0_29] : memref<256x128xf32, #tpu.memory_space<vmem>>, vector<256x128xf32>
    %c0_30 = arith.constant 0 : index
    %c0_31 = arith.constant 0 : index
    %23 = vector.load %arg5[%c0_30, %c0_31] : memref<1x128xf32, #tpu.memory_space<vmem>>, vector<1x128xf32>
    %24 = vector.broadcast %23 : vector<1x128xf32> to vector<256x128xf32>
    %25 = arith.addf %22, %24 : vector<256x128xf32>
    %cst_32 = arith.constant 0.000000e+00 : f32
    %26 = vector.broadcast %cst_32 : f32 to vector<256x128xf32>
    %27 = arith.maximumf %25, %26 : vector<256x128xf32>
    %c0_33 = arith.constant 0 : index
    %c0_34 = arith.constant 0 : index
    %c0_35 = arith.constant 0 : index
    %28 = vector.load %arg6[%c0_33, %c0_34, %c0_35] : memref<1x256x128xf32, #tpu.memory_space<vmem>>, vector<1x256x128xf32>
    %29 = vector.shape_cast %28 : vector<1x256x128xf32> to vector<256x128xf32>
    %30 = vector.shape_cast %27 : vector<256x128xf32> to vector<1x256x128xf32>
    tpu.vector_store %arg6[%c0_33, %c0_34, %c0_35], %30 {strides = array<i32>} : memref<1x256x128xf32, #tpu.memory_space<vmem>>, vector<1x256x128xf32>,
    return
  }
  func.func @transform_0(%arg0: i32, %arg1: i32, %arg2: i32) -> (i32, i32, i32, i32) {
    %c0_i32 = arith.constant 0 : i32
    %c0_i32_0 = arith.constant 0 : i32
    %c0_i32_1 = arith.constant 0 : i32
    return %arg0, %arg2, %c0_i32, %c0_i32_0 : i32, i32, i32, i32
  }
  func.func @transform_1(%arg0: i32, %arg1: i32, %arg2: i32) -> (i32, i32, i32) {
    %c0_i32 = arith.constant 0 : i32
    %c0_i32_0 = arith.constant 0 : i32
    %c0_i32_1 = arith.constant 0 : i32
    return %c0_i32, %c0_i32_0, %arg1 : i32, i32, i32
  }
  func.func @transform_2(%arg0: i32, %arg1: i32, %arg2: i32) -> (i32, i32) {
    %c0_i32 = arith.constant 0 : i32
    %c0_i32_0 = arith.constant 0 : i32
    return %c0_i32, %arg1 : i32, i32
  }
  func.func @transform_3(%arg0: i32, %arg1: i32, %arg2: i32) -> (i32, i32, i32) {
    %c0_i32 = arith.constant 0 : i32
    return %arg0, %arg2, %arg1 : i32, i32, i32
  }
}

</mosaic_0001>

<llo_original>
// kernel: tpu_custom_call.1
$region0: #{tpu_custom_call.1}
  #allocation0 [shape = 'u32[]', space=smem, size = 0x4, offset = 0x4, fixed_abs, tag = 'smem constant byte address 0x4 - core index']
  #allocation1 [shape = 'u32[72,128]{1,0:T(1,128)}', space=vmem, size = 0x9000, scoped, tag = 'internal scratch']
  #allocation2 [shape = 'f32[256,128]{1,0:T(8,128)}', space=vmem, size = 0x20000, scoped, tag = 'scratch operand']
  %s0 = inlined_call_operand.vmem [shape: f32[2,1,288,16], index: 0, kind: input, shape index: {}]
  %s1 = inlined_call_operand.vmem [shape: f32[3,16,128], index: 1, kind: input, shape index: {}]
  %s2 = inlined_call_operand.vmem [shape: f32[1,128], index: 2, kind: input, shape index: {}]
  %s3 = inlined_call_operand.hbm [shape: f32[2,256,128], index: 3, kind: output, shape index: {}]
  %s4 = sld [smem:[#allocation0]]
  $region45: #{tpu_custom_call.1} parent=0
    _
  %s6 = ssub.s32 1, %s4
  %s7 = scalar_select 0, %s6, %s4
  $region1: #{tpu_custom_call.1} parent=0
    #allocation3 [shape = 'u8[262144]{0}', space=vmem, size = 0x40000, scoped, tag = 'output window, operand 0']
    #allocation4 [shape = 's32[2]{0}', space=sflag, size = 0x8, scoped, tag = 'scoped memory for tpu_custom_call.1']
    %8 = vsyncpa [#allocation4], 0
    %s9 = scalar_lea.sflag [#allocation4], 1
    %10 = vsyncpa %s9, 0
    loop: start=0, step=1, limit=4
    $region2: #{tpu_custom_call.1} parent=1 // loop_pre_header
      _
    $region3: #{tpu_custom_call.1} parent=1 // loop_header
      %s12 = sphi 0, %s16
      %p13 = scmp.ge.s32.totalorder %s12, 4
      %s19 = sphi 0, %s38
      %s20 = sphi 0, %s34
      %s21 = sphi 0, %s30
      %s22 = sphi 0, %s19
      %s23 = sphi 0, %s20
      %s24 = sphi 0, %s21
      %s25 = sphi 0, %s22
      %s26 = sphi 0, %s23
      %s27 = sphi 0, %s24
      %s43 = sphi 0, %s45
      %s46 = sphi 0, %s43
      %s47 = sphi 0, %s46
      %s63 = sphi 0, %s47
      %s69 = sphi 0, %s71
      %s72 = sphi 0, %s69
      %s73 = sphi 0, %s72
      %s89 = sphi 0, %s73
      %s95 = sphi 0, %s97
      %s98 = sphi 0, %s95
      %s99 = sphi 0, %s98
      %s115 = sphi 0, %s99
      %s125 = sphi 0, %s127
      %s128 = sphi 0, %s125
      %s129 = sphi 0, %s128
      %s145 = sphi 0, %s129
    $region4: #{tpu_custom_call.1} parent=1 // loop_header_branch
      %15 = sbr.rel (%p13) target = $region8
    $region5: #{tpu_custom_call.1} parent=1 // loop_body
      %s17 = ssub.s32 %s12, 1
      %s18 = ssub.s32 %s12, 2
      %s28 = sadd.s32 1, %s21
      %p29 = scmp.ge.s32.totalorder %s28, 1
      %s30 = scalar_select %p29, 0, %s28
      %s31 = sadd.s32 1, %s20
      %s32 = scalar_select %p29, %s31, %s20
      %p33 = scmp.ge.s32.totalorder %s32, 1
      %s34 = scalar_select %p33, 0, %s32
      %s35 = sadd.s32 1, %s19
      %s36 = scalar_select %p33, %s35, %s19
      %p37 = scmp.ge.s32.totalorder %s36, 2
      %s38 = scalar_select %p37, 0, %s36
      %s39 = ssub.s32 %s19, %s38
      %s40 = ssub.s32 %s21, %s30
      %s41 = sor.u32 %s39, %s40
      %p42 = scmp.eq.s32.totalorder %s41, 0
      %s44 = sadd.s32 %s43, 1
      %s45 = scalar_select %p42, %s43, %s44
      %p48 = pneg %p42
      %p49 = scmp.eq.s32.totalorder %s12, 1
      %p50 = por %p48, %p49
      %p51 = scmp.ne.s32.totalorder %s43, %s46
      %p52 = scmp.eq.s32.totalorder %s12, 0
      %p53 = por %p51, %p52
      %p54 = scmp.ne.s32.totalorder %s43, %s46
      %p55 = scmp.eq.s32.totalorder %s17, 1
      %p56 = por %p54, %p55
      %p57 = scmp.ne.s32.totalorder %s46, %s47
      %p58 = scmp.eq.s32.totalorder %s17, 0
      %p59 = por %p57, %p58
      %p60 = scmp.ne.s32.totalorder %s46, %s47
      %p61 = scmp.eq.s32.totalorder %s18, 1
      %p62 = por %p60, %p61
      %p64 = scmp.ne.s32.totalorder %s47, %s63
      %p65 = scmp.eq.s32.totalorder %s18, 0
      %p66 = por %p64, %p65
      %s67 = ssub.s32 %s20, %s34
      %p68 = scmp.eq.s32.totalorder %s67, 0
      %s70 = sadd.s32 %s69, 1
      %s71 = scalar_select %p68, %s69, %s70
      %p74 = pneg %p68
      %p75 = scmp.eq.s32.totalorder %s12, 1
      %p76 = por %p74, %p75
      %p77 = scmp.ne.s32.totalorder %s69, %s72
      %p78 = scmp.eq.s32.totalorder %s12, 0
      %p79 = por %p77, %p78
      %p80 = scmp.ne.s32.totalorder %s69, %s72
      %p81 = scmp.eq.s32.totalorder %s17, 1
      %p82 = por %p80, %p81
      %p83 = scmp.ne.s32.totalorder %s72, %s73
      %p84 = scmp.eq.s32.totalorder %s17, 0
      %p85 = por %p83, %p84
      %p86 = scmp.ne.s32.totalorder %s72, %s73
      %p87 = scmp.eq.s32.totalorder %s18, 1
      %p88 = por %p86, %p87
      %p90 = scmp.ne.s32.totalorder %s73, %s89
      %p91 = scmp.eq.s32.totalorder %s18, 0
      %p92 = por %p90, %p91
      %s93 = ssub.s32 %s20, %s34
      %p94 = scmp.eq.s32.totalorder %s93, 0
      %s96 = sadd.s32 %s95, 1
      %s97 = scalar_select %p94, %s95, %s96
      %p100 = pneg %p94
      %p101 = scmp.eq.s32.totalorder %s12, 1
      %p102 = por %p100, %p101
      %p103 = scmp.ne.s32.totalorder %s95, %s98
      %p104 = scmp.eq.s32.totalorder %s12, 0
      %p105 = por %p103, %p104
      %p106 = scmp.ne.s32.totalorder %s95, %s98
      %p107 = scmp.eq.s32.totalorder %s17, 1
      %p108 = por %p106, %p107
      %p109 = scmp.ne.s32.totalorder %s98, %s99
      %p110 = scmp.eq.s32.totalorder %s17, 0
      %p111 = por %p109, %p110
      %p112 = scmp.ne.s32.totalorder %s98, %s99
      %p113 = scmp.eq.s32.totalorder %s18, 1
      %p114 = por %p112, %p113
      %p116 = scmp.ne.s32.totalorder %s99, %s115
      %p117 = scmp.eq.s32.totalorder %s18, 0
      %p118 = por %p116, %p117
      %s119 = ssub.s32 %s19, %s38
      %s120 = ssub.s32 %s21, %s30
      %s121 = sor.u32 %s119, %s120
      %s122 = ssub.s32 %s20, %s34
      %s123 = sor.u32 %s121, %s122
      %p124 = scmp.eq.s32.totalorder %s123, 0
      %s126 = sadd.s32 %s125, 1
      %s127 = scalar_select %p124, %s125, %s126
      %p130 = pneg %p124
      %p131 = scmp.eq.s32.totalorder %s12, 1
      %p132 = por %p130, %p131
      %p133 = scmp.ne.s32.totalorder %s125, %s128
      %p134 = scmp.eq.s32.totalorder %s12, 0
      %p135 = por %p133, %p134
      %p136 = scmp.ne.s32.totalorder %s125, %s128
      %p137 = scmp.eq.s32.totalorder %s17, 1
      %p138 = por %p136, %p137
      %p139 = scmp.ne.s32.totalorder %s128, %s129
      %p140 = scmp.eq.s32.totalorder %s17, 0
      %p141 = por %p139, %p140
      %p142 = scmp.ne.s32.totalorder %s128, %s129
      %p143 = scmp.eq.s32.totalorder %s18, 1
      %p144 = por %p142, %p143
      %p146 = scmp.ne.s32.totalorder %s129, %s145
      %p147 = scmp.eq.s32.totalorder %s18, 0
      %p148 = por %p146, %p147
      %p149 = scmp.le.s32.totalorder 1, %s12
      %p150 = scmp.lt.s32.totalorder %s12, 3
      %p151 = pnand %p149, %p150
      %p152 = pneg %p151
      // Predicated region
      $region9: #{tpu_custom_call.1} parent=5 // pred_check
        _
      $region10: #{tpu_custom_call.1} parent=5 // pred_check_branch
        %154 = sbr.rel (%p151) target = $region12
      $region11: #{tpu_custom_call.1} parent=5 // pred_region
        %s155 = ssub.s32 %s12, 1
        // Predicated region
        $region13: #{tpu_custom_call.1} parent=11 // pred_check
          %p156 = pneg %p85
        $region14: #{tpu_custom_call.1} parent=11 // pred_check_branch
          %158 = sbr.rel (%p156) target = $region16
        $region15: #{tpu_custom_call.1} parent=11 // pred_region
          %p159 = scmp.lt.s32.totalorder %s23, 0
          %s160 = scalar_select %p159, %s23, 0
          %s161 = smul.addr %s160, 8
          %s162 = scalar_lea.vmem %s1, %s161
        $region16: #{tpu_custom_call.1} parent=11 // pred_fallthru
          _
        // Predicated region
        $region17: #{tpu_custom_call.1} parent=11 // pred_check
          %p163 = pneg %p111
        $region18: #{tpu_custom_call.1} parent=11 // pred_check_branch
          %165 = sbr.rel (%p163) target = $region20
        $region19: #{tpu_custom_call.1} parent=11 // pred_region
          %p166 = scmp.lt.s32.totalorder %s23, 0
          %s167 = scalar_select %p166, %s23, 0
          %s168 = scalar_lea.vmem %s2, %s167
        $region20: #{tpu_custom_call.1} parent=11 // pred_fallthru
          _
      $region12: #{tpu_custom_call.1} parent=5 // pred_fallthru
        _
      %p169 = scmp.lt.s32.totalorder %s12, 2
      // Predicated region
      $region21: #{tpu_custom_call.1} parent=5 // pred_check
        %p170 = pneg %p169
      $region22: #{tpu_custom_call.1} parent=5 // pred_check_branch
        %172 = sbr.rel (%p170) target = $region24
      $region23: #{tpu_custom_call.1} parent=5 // pred_region
        // Predicated region
        $region25: #{tpu_custom_call.1} parent=23 // pred_check
          %p173 = pneg %p53
        $region26: #{tpu_custom_call.1} parent=23 // pred_check_branch
          %175 = sbr.rel (%p173) target = $region28
        $region27: #{tpu_custom_call.1} parent=23 // pred_region
          %p176 = scmp.lt.s32.totalorder %s19, 1
          %s177 = scalar_select %p176, %s19, 1
          %p178 = scmp.lt.s32.totalorder %s21, 0
          %s179 = scalar_select %p178, %s21, 0
          %s180 = smul.addr %s179, 36
          %s181 = smul.addr %s177, 36
          %s182 = sadd.s32 %s180, %s181
          %s183 = smul.addr %s182, 8
          %s184 = scalar_lea.vmem %s0, %s183
        $region28: #{tpu_custom_call.1} parent=23 // pred_fallthru
          _
      $region24: #{tpu_custom_call.1} parent=5 // pred_fallthru
        _
      %p185 = scmp.le.s32.totalorder 1, %s12
      %p186 = scmp.lt.s32.totalorder %s12, 3
      %p187 = pnand %p185, %p186
      %p188 = pneg %p187
      // Predicated region
      $region29: #{tpu_custom_call.1} parent=5 // pred_check
        _
      $region30: #{tpu_custom_call.1} parent=5 // pred_check_branch
        %190 = sbr.rel (%p187) target = $region32
      $region31: #{tpu_custom_call.1} parent=5 // pred_region
        %s191 = ssub.s32 %s12, 1
        %p192 = scmp.lt.s32.totalorder %s22, 1
        %s193 = scalar_select %p192, %s22, 1
        %p194 = scmp.lt.s32.totalorder %s24, 0
        %s195 = scalar_select %p194, %s24, 0
        %s196 = smul.addr %s195, 36
        %s197 = smul.addr %s193, 36
        %s198 = sadd.s32 %s196, %s197
        %s199 = smul.addr %s198, 8
        %s200 = scalar_lea.vmem %s0, %s199
        %p201 = pneg %p59
        %p202 = pneg %p56
        %p203 = scmp.lt.s32.totalorder %s23, 0
        %s204 = scalar_select %p203, %s23, 0
        %s205 = smul.addr %s204, 8
        %s206 = scalar_lea.vmem %s1, %s205
        %p207 = pneg %p85
        %p208 = pneg %p82
        %p209 = scmp.lt.s32.totalorder %s23, 0
        %s210 = scalar_select %p209, %s23, 0
        %s211 = scalar_lea.vmem %s2, %s210
        %p212 = pneg %p111
        %p213 = pneg %p108
        %p214 = pneg %p141
        %p215 = pneg %p138
        %s216 = sand.u32 %s128, 1
        %s217 = scalar_lea.sflag [#allocation4], %s216
        %s218 = sand.u32 %s128, 1
        %s219 = smul.addr %s218, 256
        %s220 = scalar_lea.vmem [#allocation3], %s219
        %p221 = scmp.lt.s32.totalorder %s22, 1
        %s222 = scalar_select %p221, %s22, 1
        %p223 = scmp.lt.s32.totalorder %s24, 0
        %s224 = scalar_select %p223, %s24, 0
        %s225 = smul.addr %s224, 36
        %s226 = smul.addr %s222, 36
        %s227 = sadd.s32 %s225, %s226
        %s228 = smul.addr %s227, 8
        %s229 = scalar_lea.vmem %s0, %s228
        %p230 = scmp.lt.s32.totalorder %s23, 0
        %s231 = scalar_select %p230, %s23, 0
        %s232 = smul.addr %s231, 8
        %s233 = scalar_lea.vmem %s1, %s232
        %p234 = scmp.lt.s32.totalorder %s23, 0
        %s235 = scalar_select %p234, %s23, 0
        %s236 = scalar_lea.vmem %s2, %s235
        %s237 = smul.u32 32, %s24
        %v238 = vld [vmem:[%s229] sm:$0xff]
        %v239 = vld [vmem:[%s229 + $0x8] sm:$0xff]
        %v240 = vld [vmem:[%s229 + $0x10] sm:$0xff]
        %v241 = vld [vmem:[%s229 + $0x18] sm:$0xff]
        %v242 = vld [vmem:[%s229 + $0x20] sm:$0xff]
        %v243 = vld [vmem:[%s229 + $0x28] sm:$0xff]
        %v244 = vld [vmem:[%s229 + $0x30] sm:$0xff]
        %v245 = vld [vmem:[%s229 + $0x38] sm:$0xff]
        %v246 = vld [vmem:[%s229 + $0x40] sm:$0xff]
        %v247 = vld [vmem:[%s229 + $0x48] sm:$0xff]
        %v248 = vld [vmem:[%s229 + $0x50] sm:$0xff]
        %v249 = vld [vmem:[%s229 + $0x58] sm:$0xff]
        %v250 = vld [vmem:[%s229 + $0x60] sm:$0xff]
        %v251 = vld [vmem:[%s229 + $0x68] sm:$0xff]
        %v252 = vld [vmem:[%s229 + $0x70] sm:$0xff]
        %v253 = vld [vmem:[%s229 + $0x78] sm:$0xff]
        %v254 = vld [vmem:[%s229 + $0x80] sm:$0xff]
        %v255 = vld [vmem:[%s229 + $0x88] sm:$0xff]
        %v256 = vld [vmem:[%s229 + $0x90] sm:$0xff]
        %v257 = vld [vmem:[%s229 + $0x98] sm:$0xff]
        %v258 = vld [vmem:[%s229 + $0xa0] sm:$0xff]
        %v259 = vld [vmem:[%s229 + $0xa8] sm:$0xff]
        %v260 = vld [vmem:[%s229 + $0xb0] sm:$0xff]
        %v261 = vld [vmem:[%s229 + $0xb8] sm:$0xff]
        %v262 = vld [vmem:[%s229 + $0xc0] sm:$0xff]
        %v263 = vld [vmem:[%s229 + $0xc8] sm:$0xff]
        %v264 = vld [vmem:[%s229 + $0xd0] sm:$0xff]
        %v265 = vld [vmem:[%s229 + $0xd8] sm:$0xff]
        %v266 = vld [vmem:[%s229 + $0xe0] sm:$0xff]
        %v267 = vld [vmem:[%s229 + $0xe8] sm:$0xff]
        %v268 = vld [vmem:[%s229 + $0xf0] sm:$0xff]
        %v269 = vld [vmem:[%s229 + $0xf8] sm:$0xff]
        %v270 = vld [vmem:[%s233] sm:$0xff]
        %v271 = vld [vmem:[%s233 + $0x8] sm:$0xff]
        %vm272 = vcmask 130048
        %v274 = vsel %vm272, %v238, 0
        %v277 = vsel %vm272, %v239, 0
        %v280 = vsel %vm272, %v240, 0
        %v283 = vsel %vm272, %v241, 0
        %v286 = vsel %vm272, %v242, 0
        %v289 = vsel %vm272, %v243, 0
        %v292 = vsel %vm272, %v244, 0
        %v295 = vsel %vm272, %v245, 0
        %v298 = vsel %vm272, %v246, 0
        %v301 = vsel %vm272, %v247, 0
        %v304 = vsel %vm272, %v248, 0
        %v307 = vsel %vm272, %v249, 0
        %v310 = vsel %vm272, %v250, 0
        %v313 = vsel %vm272, %v251, 0
        %v316 = vsel %vm272, %v252, 0
        %v319 = vsel %vm272, %v253, 0
        %v322 = vsel %vm272, %v254, 0
        %v325 = vsel %vm272, %v255, 0
        %v328 = vsel %vm272, %v256, 0
        %v331 = vsel %vm272, %v257, 0
        %v334 = vsel %vm272, %v258, 0
        %v337 = vsel %vm272, %v259, 0
        %v340 = vsel %vm272, %v260, 0
        %v343 = vsel %vm272, %v261, 0
        %v346 = vsel %vm272, %v262, 0
        %v349 = vsel %vm272, %v263, 0
        %v352 = vsel %vm272, %v264, 0
        %v355 = vsel %vm272, %v265, 0
        %v358 = vsel %vm272, %v266, 0
        %v361 = vsel %vm272, %v267, 0
        %v364 = vsel %vm272, %v268, 0
        %v367 = vsel %vm272, %v269, 0
        %369 = vmatpush.msra.mxu0 0.0
        %370 = vmatpush.msra.mxu0 0.0
        %371 = vmatpush.msra.mxu0 0.0
        %372 = vmatpush.msra.mxu0 0.0
        %373 = vmatpush.msra.mxu0 0.0
        %374 = vmatpush.msra.mxu0 0.0
        %375 = vmatpush.msra.mxu0 0.0
        %376 = vmatpush.msra.mxu0 0.0
        %377 = vmatpush.msra.mxu0 0.0
        %378 = vmatpush.msra.mxu0 0.0
        %379 = vmatpush.msra.mxu0 0.0
        %380 = vmatpush.msra.mxu0 0.0
        %381 = vmatpush.msra.mxu0 0.0
        %382 = vmatpush.msra.mxu0 0.0
        %383 = vmatpush.msra.mxu0 %v271
        %384 = vmatpush.msra.mxu0 %v270
        %385 = vmatmul.f32.gmra.mxu0 %v274
        %v386 = vpop.f32.mrf.mxu0
        %v387 = vadd.f32 0.0, %v386
        %388 = vmatmul.f32.gmra.mxu0 %v277
        %v389 = vpop.f32.mrf.mxu0
        %v390 = vadd.f32 0.0, %v389
        %391 = vmatmul.f32.gmra.mxu0 %v280
        %v392 = vpop.f32.mrf.mxu0
        %v393 = vadd.f32 0.0, %v392
        %394 = vmatmul.f32.gmra.mxu0 %v283
        %v395 = vpop.f32.mrf.mxu0
        %v396 = vadd.f32 0.0, %v395
        %397 = vmatmul.f32.gmra.mxu0 %v286
        %v398 = vpop.f32.mrf.mxu0
        %v399 = vadd.f32 0.0, %v398
        %400 = vmatmul.f32.gmra.mxu0 %v289
        %v401 = vpop.f32.mrf.mxu0
        %v402 = vadd.f32 0.0, %v401
        %403 = vmatmul.f32.gmra.mxu0 %v292
        %v404 = vpop.f32.mrf.mxu0
        %v405 = vadd.f32 0.0, %v404
        %406 = vmatmul.f32.gmra.mxu0 %v295
        %v407 = vpop.f32.mrf.mxu0
        %v408 = vadd.f32 0.0, %v407
        %409 = vmatmul.f32.gmra.mxu0 %v298
        %v410 = vpop.f32.mrf.mxu0
        %v411 = vadd.f32 0.0, %v410
        %412 = vmatmul.f32.gmra.mxu0 %v301
        %v413 = vpop.f32.mrf.mxu0
        %v414 = vadd.f32 0.0, %v413
        %415 = vmatmul.f32.gmra.mxu0 %v304
        %v416 = vpop.f32.mrf.mxu0
        %v417 = vadd.f32 0.0, %v416
        %418 = vmatmul.f32.gmra.mxu0 %v307
        %v419 = vpop.f32.mrf.mxu0
        %v420 = vadd.f32 0.0, %v419
        %421 = vmatmul.f32.gmra.mxu0 %v310
        %v422 = vpop.f32.mrf.mxu0
        %v423 = vadd.f32 0.0, %v422
        %424 = vmatmul.f32.gmra.mxu0 %v313
        %v425 = vpop.f32.mrf.mxu0
        %v426 = vadd.f32 0.0, %v425
        %427 = vmatmul.f32.gmra.mxu0 %v316
        %v428 = vpop.f32.mrf.mxu0
        %v429 = vadd.f32 0.0, %v428
        %430 = vmatmul.f32.gmra.mxu0 %v319
        %v431 = vpop.f32.mrf.mxu0
        %v432 = vadd.f32 0.0, %v431
        %433 = vmatmul.f32.gmra.mxu0 %v322
        %v434 = vpop.f32.mrf.mxu0
        %v435 = vadd.f32 0.0, %v434
        %436 = vmatmul.f32.gmra.mxu0 %v325
        %v437 = vpop.f32.mrf.mxu0
        %v438 = vadd.f32 0.0, %v437
        %439 = vmatmul.f32.gmra.mxu0 %v328
        %v440 = vpop.f32.mrf.mxu0
        %v441 = vadd.f32 0.0, %v440
        %442 = vmatmul.f32.gmra.mxu0 %v331
        %v443 = vpop.f32.mrf.mxu0
        %v444 = vadd.f32 0.0, %v443
        %445 = vmatmul.f32.gmra.mxu0 %v334
        %v446 = vpop.f32.mrf.mxu0
        %v447 = vadd.f32 0.0, %v446
        %448 = vmatmul.f32.gmra.mxu0 %v337
        %v449 = vpop.f32.mrf.mxu0
        %v450 = vadd.f32 0.0, %v449
        %451 = vmatmul.f32.gmra.mxu0 %v340
        %v452 = vpop.f32.mrf.mxu0
        %v453 = vadd.f32 0.0, %v452
        %454 = vmatmul.f32.gmra.mxu0 %v343
        %v455 = vpop.f32.mrf.mxu0
        %v456 = vadd.f32 0.0, %v455
        %457 = vmatmul.f32.gmra.mxu0 %v346
        %v458 = vpop.f32.mrf.mxu0
        %v459 = vadd.f32 0.0, %v458
        %460 = vmatmul.f32.gmra.mxu0 %v349
        %v461 = vpop.f32.mrf.mxu0
        %v462 = vadd.f32 0.0, %v461
        %463 = vmatmul.f32.gmra.mxu0 %v352
        %v464 = vpop.f32.mrf.mxu0
        %v465 = vadd.f32 0.0, %v464
        %466 = vmatmul.f32.gmra.mxu0 %v355
        %v467 = vpop.f32.mrf.mxu0
        %v468 = vadd.f32 0.0, %v467
        %469 = vmatmul.f32.gmra.mxu0 %v358
        %v470 = vpop.f32.mrf.mxu0
        %v471 = vadd.f32 0.0, %v470
        %472 = vmatmul.f32.gmra.mxu0 %v361
        %v473 = vpop.f32.mrf.mxu0
        %v474 = vadd.f32 0.0, %v473
        %475 = vmatmul.f32.gmra.mxu0 %v364
        %v476 = vpop.f32.mrf.mxu0
        %v477 = vadd.f32 0.0, %v476
        %478 = vmatmul.f32.gmra.mxu0 %v367
        %v479 = vpop.f32.mrf.mxu0
        %v480 = vadd.f32 0.0, %v479
        %481 = vdwg.mxu0
        %482 = vst [vmem:[#allocation2] sm:$0xff] %v387
        %483 = vst [vmem:[#allocation2 + $0x8] sm:$0xff] %v390
        %484 = vst [vmem:[#allocation2 + $0x10] sm:$0xff] %v393
        %485 = vst [vmem:[#allocation2 + $0x18] sm:$0xff] %v396
        %486 = vst [vmem:[#allocation2 + $0x20] sm:$0xff] %v399
        %487 = vst [vmem:[#allocation2 + $0x28] sm:$0xff] %v402
        %488 = vst [vmem:[#allocation2 + $0x30] sm:$0xff] %v405
        %489 = vst [vmem:[#allocation2 + $0x38] sm:$0xff] %v408
        %490 = vst [vmem:[#allocation2 + $0x40] sm:$0xff] %v411
        %491 = vst [vmem:[#allocation2 + $0x48] sm:$0xff] %v414
        %492 = vst [vmem:[#allocation2 + $0x50] sm:$0xff] %v417
        %493 = vst [vmem:[#allocation2 + $0x58] sm:$0xff] %v420
        %494 = vst [vmem:[#allocation2 + $0x60] sm:$0xff] %v423
        %495 = vst [vmem:[#allocation2 + $0x68] sm:$0xff] %v426
        %496 = vst [vmem:[#allocation2 + $0x70] sm:$0xff] %v429
        %497 = vst [vmem:[#allocation2 + $0x78] sm:$0xff] %v432
        %498 = vst [vmem:[#allocation2 + $0x80] sm:$0xff] %v435
        %499 = vst [vmem:[#allocation2 + $0x88] sm:$0xff] %v438
        %500 = vst [vmem:[#allocation2 + $0x90] sm:$0xff] %v441
        %501 = vst [vmem:[#allocation2 + $0x98] sm:$0xff] %v444
        %502 = vst [vmem:[#allocation2 + $0xa0] sm:$0xff] %v447
        %503 = vst [vmem:[#allocation2 + $0xa8] sm:$0xff] %v450
        %504 = vst [vmem:[#allocation2 + $0xb0] sm:$0xff] %v453
        %505 = vst [vmem:[#allocation2 + $0xb8] sm:$0xff] %v456
        %506 = vst [vmem:[#allocation2 + $0xc0] sm:$0xff] %v459
        %507 = vst [vmem:[#allocation2 + $0xc8] sm:$0xff] %v462
        %508 = vst [vmem:[#allocation2 + $0xd0] sm:$0xff] %v465
        %509 = vst [vmem:[#allocation2 + $0xd8] sm:$0xff] %v468
        %510 = vst [vmem:[#allocation2 + $0xe0] sm:$0xff] %v471
        %511 = vst [vmem:[#allocation2 + $0xe8] sm:$0xff] %v474
        %512 = vst [vmem:[#allocation2 + $0xf0] sm:$0xff] %v477
        %513 = vst [vmem:[#allocation2 + $0xf8] sm:$0xff] %v480
        %v514 = vld [vmem:[#allocation2] sm:$0xff]
        %v515 = vld [vmem:[#allocation2 + $0x8] sm:$0xff]
        %v516 = vld [vmem:[#allocation2 + $0x10] sm:$0xff]
        %v517 = vld [vmem:[#allocation2 + $0x18] sm:$0xff]
        %v518 = vld [vmem:[#allocation2 + $0x20] sm:$0xff]
        %v519 = vld [vmem:[#allocation2 + $0x28] sm:$0xff]
        %v520 = vld [vmem:[#allocation2 + $0x30] sm:$0xff]
        %v521 = vld [vmem:[#allocation2 + $0x38] sm:$0xff]
        %v522 = vld [vmem:[#allocation2 + $0x40] sm:$0xff]
        %v523 = vld [vmem:[#allocation2 + $0x48] sm:$0xff]
        %v524 = vld [vmem:[#allocation2 + $0x50] sm:$0xff]
        %v525 = vld [vmem:[#allocation2 + $0x58] sm:$0xff]
        %v526 = vld [vmem:[#allocation2 + $0x60] sm:$0xff]
        %v527 = vld [vmem:[#allocation2 + $0x68] sm:$0xff]
        %v528 = vld [vmem:[#allocation2 + $0x70] sm:$0xff]
        %v529 = vld [vmem:[#allocation2 + $0x78] sm:$0xff]
        %v530 = vld [vmem:[#allocation2 + $0x80] sm:$0xff]
        %v531 = vld [vmem:[#allocation2 + $0x88] sm:$0xff]
        %v532 = vld [vmem:[#allocation2 + $0x90] sm:$0xff]
        %v533 = vld [vmem:[#allocation2 + $0x98] sm:$0xff]
        %v534 = vld [vmem:[#allocation2 + $0xa0] sm:$0xff]
        %v535 = vld [vmem:[#allocation2 + $0xa8] sm:$0xff]
        %v536 = vld [vmem:[#allocation2 + $0xb0] sm:$0xff]
        %v537 = vld [vmem:[#allocation2 + $0xb8] sm:$0xff]
        %v538 = vld [vmem:[#allocation2 + $0xc0] sm:$0xff]
        %v539 = vld [vmem:[#allocation2 + $0xc8] sm:$0xff]
        %v540 = vld [vmem:[#allocation2 + $0xd0] sm:$0xff]
        %v541 = vld [vmem:[#allocation2 + $0xd8] sm:$0xff]
        %v542 = vld [vmem:[#allocation2 + $0xe0] sm:$0xff]
        %v543 = vld [vmem:[#allocation2 + $0xe8] sm:$0xff]
        %v544 = vld [vmem:[#allocation2 + $0xf0] sm:$0xff]
        %v545 = vld [vmem:[#allocation2 + $0xf8] sm:$0xff]
        %v546 = vld [vmem:[%s229 + $0x10] sm:$0xff]
        %v547 = vld [vmem:[%s229 + $0x18] sm:$0xff]
        %v548 = vld [vmem:[%s229 + $0x20] sm:$0xff]
        %v549 = vld [vmem:[%s229 + $0x28] sm:$0xff]
        %v550 = vld [vmem:[%s229 + $0x30] sm:$0xff]
        %v551 = vld [vmem:[%s229 + $0x38] sm:$0xff]
        %v552 = vld [vmem:[%s229 + $0x40] sm:$0xff]
        %v553 = vld [vmem:[%s229 + $0x48] sm:$0xff]
        %v554 = vld [vmem:[%s229 + $0x50] sm:$0xff]
        %v555 = vld [vmem:[%s229 + $0x58] sm:$0xff]
        %v556 = vld [vmem:[%s229 + $0x60] sm:$0xff]
        %v557 = vld [vmem:[%s229 + $0x68] sm:$0xff]
        %v558 = vld [vmem:[%s229 + $0x70] sm:$0xff]
        %v559 = vld [vmem:[%s229 + $0x78] sm:$0xff]
        %v560 = vld [vmem:[%s229 + $0x80] sm:$0xff]
        %v561 = vld [vmem:[%s229 + $0x88] sm:$0xff]
        %v562 = vld [vmem:[%s229 + $0x90] sm:$0xff]
        %v563 = vld [vmem:[%s229 + $0x98] sm:$0xff]
        %v564 = vld [vmem:[%s229 + $0xa0] sm:$0xff]
        %v565 = vld [vmem:[%s229 + $0xa8] sm:$0xff]
        %v566 = vld [vmem:[%s229 + $0xb0] sm:$0xff]
        %v567 = vld [vmem:[%s229 + $0xb8] sm:$0xff]
        %v568 = vld [vmem:[%s229 + $0xc0] sm:$0xff]
        %v569 = vld [vmem:[%s229 + $0xc8] sm:$0xff]
        %v570 = vld [vmem:[%s229 + $0xd0] sm:$0xff]
        %v571 = vld [vmem:[%s229 + $0xd8] sm:$0xff]
        %v572 = vld [vmem:[%s229 + $0xe0] sm:$0xff]
        %v573 = vld [vmem:[%s229 + $0xe8] sm:$0xff]
        %v574 = vld [vmem:[%s229 + $0xf0] sm:$0xff]
        %v575 = vld [vmem:[%s229 + $0xf8] sm:$0xff]
        %v576 = vld [vmem:[%s229 + $0x100] sm:$0xff]
        %v577 = vld [vmem:[%s229 + $0x108] sm:$0xff]
        %s578 = scalar_lea.vmem %s233, 16
        %v579 = vld [vmem:[%s578] sm:$0xff]
        %v580 = vld [vmem:[%s578 + $0x8] sm:$0xff]
        %v582 = vsel %vm272, %v546, 0
        %v585 = vsel %vm272, %v547, 0
        %v588 = vsel %vm272, %v548, 0
        %v591 = vsel %vm272, %v549, 0
        %v594 = vsel %vm272, %v550, 0
        %v597 = vsel %vm272, %v551, 0
        %v600 = vsel %vm272, %v552, 0
        %v603 = vsel %vm272, %v553, 0
        %v606 = vsel %vm272, %v554, 0
        %v609 = vsel %vm272, %v555, 0
        %v612 = vsel %vm272, %v556, 0
        %v615 = vsel %vm272, %v557, 0
        %v618 = vsel %vm272, %v558, 0
        %v621 = vsel %vm272, %v559, 0
        %v624 = vsel %vm272, %v560, 0
        %v627 = vsel %vm272, %v561, 0
        %v630 = vsel %vm272, %v562, 0
        %v633 = vsel %vm272, %v563, 0
        %v636 = vsel %vm272, %v564, 0
        %v639 = vsel %vm272, %v565, 0
        %v642 = vsel %vm272, %v566, 0
        %v645 = vsel %vm272, %v567, 0
        %v648 = vsel %vm272, %v568, 0
        %v651 = vsel %vm272, %v569, 0
        %v654 = vsel %vm272, %v570, 0
        %v657 = vsel %vm272, %v571, 0
        %v660 = vsel %vm272, %v572, 0
        %v663 = vsel %vm272, %v573, 0
        %v666 = vsel %vm272, %v574, 0
        %v669 = vsel %vm272, %v575, 0
        %v672 = vsel %vm272, %v576, 0
        %v675 = vsel %vm272, %v577, 0
        %677 = vmatpush.msra.mxu0 0.0
        %678 = vmatpush.msra.mxu0 0.0
        %679 = vmatpush.msra.mxu0 0.0
        %680 = vmatpush.msra.mxu0 0.0
        %681 = vmatpush.msra.mxu0 0.0
        %682 = vmatpush.msra.mxu0 0.0
        %683 = vmatpush.msra.mxu0 0.0
        %684 = vmatpush.msra.mxu0 0.0
        %685 = vmatpush.msra.mxu0 0.0
        %686 = vmatpush.msra.mxu0 0.0
        %687 = vmatpush.msra.mxu0 0.0
        %688 = vmatpush.msra.mxu0 0.0
        %689 = vmatpush.msra.mxu0 0.0
        %690 = vmatpush.msra.mxu0 0.0
        %691 = vmatpush.msra.mxu0 %v580
        %692 = vmatpush.msra.mxu0 %v579
        %693 = vmatmul.f32.gmra.mxu0 %v582
        %v694 = vpop.f32.mrf.mxu0
        %v695 = vadd.f32 0.0, %v694
        %696 = vmatmul.f32.gmra.mxu0 %v585
        %v697 = vpop.f32.mrf.mxu0
        %v698 = vadd.f32 0.0, %v697
        %699 = vmatmul.f32.gmra.mxu0 %v588
        %v700 = vpop.f32.mrf.mxu0
        %v701 = vadd.f32 0.0, %v700
        %702 = vmatmul.f32.gmra.mxu0 %v591
        %v703 = vpop.f32.mrf.mxu0
        %v704 = vadd.f32 0.0, %v703
        %705 = vmatmul.f32.gmra.mxu0 %v594
        %v706 = vpop.f32.mrf.mxu0
        %v707 = vadd.f32 0.0, %v706
        %708 = vmatmul.f32.gmra.mxu0 %v597
        %v709 = vpop.f32.mrf.mxu0
        %v710 = vadd.f32 0.0, %v709
        %711 = vmatmul.f32.gmra.mxu0 %v600
        %v712 = vpop.f32.mrf.mxu0
        %v713 = vadd.f32 0.0, %v712
        %714 = vmatmul.f32.gmra.mxu0 %v603
        %v715 = vpop.f32.mrf.mxu0
        %v716 = vadd.f32 0.0, %v715
        %717 = vmatmul.f32.gmra.mxu0 %v606
        %v718 = vpop.f32.mrf.mxu0
        %v719 = vadd.f32 0.0, %v718
        %720 = vmatmul.f32.gmra.mxu0 %v609
        %v721 = vpop.f32.mrf.mxu0
        %v722 = vadd.f32 0.0, %v721
        %723 = vmatmul.f32.gmra.mxu0 %v612
        %v724 = vpop.f32.mrf.mxu0
        %v725 = vadd.f32 0.0, %v724
        %726 = vmatmul.f32.gmra.mxu0 %v615
        %v727 = vpop.f32.mrf.mxu0
        %v728 = vadd.f32 0.0, %v727
        %729 = vmatmul.f32.gmra.mxu0 %v618
        %v730 = vpop.f32.mrf.mxu0
        %v731 = vadd.f32 0.0, %v730
        %732 = vmatmul.f32.gmra.mxu0 %v621
        %v733 = vpop.f32.mrf.mxu0
        %v734 = vadd.f32 0.0, %v733
        %735 = vmatmul.f32.gmra.mxu0 %v624
        %v736 = vpop.f32.mrf.mxu0
        %v737 = vadd.f32 0.0, %v736
        %738 = vmatmul.f32.gmra.mxu0 %v627
        %v739 = vpop.f32.mrf.mxu0
        %v740 = vadd.f32 0.0, %v739
        %741 = vmatmul.f32.gmra.mxu0 %v630
        %v742 = vpop.f32.mrf.mxu0
        %v743 = vadd.f32 0.0, %v742
        %744 = vmatmul.f32.gmra.mxu0 %v633
        %v745 = vpop.f32.mrf.mxu0
        %v746 = vadd.f32 0.0, %v745
        %747 = vmatmul.f32.gmra.mxu0 %v636
        %v748 = vpop.f32.mrf.mxu0
        %v749 = vadd.f32 0.0, %v748
        %750 = vmatmul.f32.gmra.mxu0 %v639
        %v751 = vpop.f32.mrf.mxu0
        %v752 = vadd.f32 0.0, %v751
        %753 = vmatmul.f32.gmra.mxu0 %v642
        %v754 = vpop.f32.mrf.mxu0
        %v755 = vadd.f32 0.0, %v754
        %756 = vmatmul.f32.gmra.mxu0 %v645
        %v757 = vpop.f32.mrf.mxu0
        %v758 = vadd.f32 0.0, %v757
        %759 = vmatmul.f32.gmra.mxu0 %v648
        %v760 = vpop.f32.mrf.mxu0
        %v761 = vadd.f32 0.0, %v760
        %762 = vmatmul.f32.gmra.mxu0 %v651
        %v763 = vpop.f32.mrf.mxu0
        %v764 = vadd.f32 0.0, %v763
        %765 = vmatmul.f32.gmra.mxu0 %v654
        %v766 = vpop.f32.mrf.mxu0
        %v767 = vadd.f32 0.0, %v766
        %768 = vmatmul.f32.gmra.mxu0 %v657
        %v769 = vpop.f32.mrf.mxu0
        %v770 = vadd.f32 0.0, %v769
        %771 = vmatmul.f32.gmra.mxu0 %v660
        %v772 = vpop.f32.mrf.mxu0
        %v773 = vadd.f32 0.0, %v772
        %774 = vmatmul.f32.gmra.mxu0 %v663
        %v775 = vpop.f32.mrf.mxu0
        %v776 = vadd.f32 0.0, %v775
        %777 = vmatmul.f32.gmra.mxu0 %v666
        %v778 = vpop.f32.mrf.mxu0
        %v779 = vadd.f32 0.0, %v778
        %780 = vmatmul.f32.gmra.mxu0 %v669
        %v781 = vpop.f32.mrf.mxu0
        %v782 = vadd.f32 0.0, %v781
        %783 = vmatmul.f32.gmra.mxu0 %v672
        %v784 = vpop.f32.mrf.mxu0
        %v785 = vadd.f32 0.0, %v784
        %786 = vmatmul.f32.gmra.mxu0 %v675
        %v787 = vpop.f32.mrf.mxu0
        %v788 = vadd.f32 0.0, %v787
        %789 = vdwg.mxu0
        %v790 = vadd.f32 %v514, %v695
        %v791 = vadd.f32 %v515, %v698
        %v792 = vadd.f32 %v516, %v701
        %v793 = vadd.f32 %v517, %v704
        %v794 = vadd.f32 %v518, %v707
        %v795 = vadd.f32 %v519, %v710
        %v796 = vadd.f32 %v520, %v713
        %v797 = vadd.f32 %v521, %v716
        %v798 = vadd.f32 %v522, %v719
        %v799 = vadd.f32 %v523, %v722
        %v800 = vadd.f32 %v524, %v725
        %v801 = vadd.f32 %v525, %v728
        %v802 = vadd.f32 %v526, %v731
        %v803 = vadd.f32 %v527, %v734
        %v804 = vadd.f32 %v528, %v737
        %v805 = vadd.f32 %v529, %v740
        %v806 = vadd.f32 %v530, %v743
        %v807 = vadd.f32 %v531, %v746
        %v808 = vadd.f32 %v532, %v749
        %v809 = vadd.f32 %v533, %v752
        %v810 = vadd.f32 %v534, %v755
        %v811 = vadd.f32 %v535, %v758
        %v812 = vadd.f32 %v536, %v761
        %v813 = vadd.f32 %v537, %v764
        %v814 = vadd.f32 %v538, %v767
        %v815 = vadd.f32 %v539, %v770
        %v816 = vadd.f32 %v540, %v773
        %v817 = vadd.f32 %v541, %v776
        %v818 = vadd.f32 %v542, %v779
        %v819 = vadd.f32 %v543, %v782
        %v820 = vadd.f32 %v544, %v785
        %v821 = vadd.f32 %v545, %v788
        %822 = vst [vmem:[#allocation2] sm:$0xff] %v790
        %823 = vst [vmem:[#allocation2 + $0x8] sm:$0xff] %v791
        %824 = vst [vmem:[#allocation2 + $0x10] sm:$0xff] %v792
        %825 = vst [vmem:[#allocation2 + $0x18] sm:$0xff] %v793
        %826 = vst [vmem:[#allocation2 + $0x20] sm:$0xff] %v794
        %827 = vst [vmem:[#allocation2 + $0x28] sm:$0xff] %v795
        %828 = vst [vmem:[#allocation2 + $0x30] sm:$0xff] %v796
        %829 = vst [vmem:[#allocation2 + $0x38] sm:$0xff] %v797
        %830 = vst [vmem:[#allocation2 + $0x40] sm:$0xff] %v798
        %831 = vst [vmem:[#allocation2 + $0x48] sm:$0xff] %v799
        %832 = vst [vmem:[#allocation2 + $0x50] sm:$0xff] %v800
        %833 = vst [vmem:[#allocation2 + $0x58] sm:$0xff] %v801
        %834 = vst [vmem:[#allocation2 + $0x60] sm:$0xff] %v802
        %835 = vst [vmem:[#allocation2 + $0x68] sm:$0xff] %v803
        %836 = vst [vmem:[#allocation2 + $0x70] sm:$0xff] %v804
        %837 = vst [vmem:[#allocation2 + $0x78] sm:$0xff] %v805
        %838 = vst [vmem:[#allocation2 + $0x80] sm:$0xff] %v806
        %839 = vst [vmem:[#allocation2 + $0x88] sm:$0xff] %v807
        %840 = vst [vmem:[#allocation2 + $0x90] sm:$0xff] %v808
        %841 = vst [vmem:[#allocation2 + $0x98] sm:$0xff] %v809
        %842 = vst [vmem:[#allocation2 + $0xa0] sm:$0xff] %v810
        %843 = vst [vmem:[#allocation2 + $0xa8] sm:$0xff] %v811
        %844 = vst [vmem:[#allocation2 + $0xb0] sm:$0xff] %v812
        %845 = vst [vmem:[#allocation2 + $0xb8] sm:$0xff] %v813
        %846 = vst [vmem:[#allocation2 + $0xc0] sm:$0xff] %v814
        %847 = vst [vmem:[#allocation2 + $0xc8] sm:$0xff] %v815
        %848 = vst [vmem:[#allocation2 + $0xd0] sm:$0xff] %v816
        %849 = vst [vmem:[#allocation2 + $0xd8] sm:$0xff] %v817
        %850 = vst [vmem:[#allocation2 + $0xe0] sm:$0xff] %v818
        %851 = vst [vmem:[#allocation2 + $0xe8] sm:$0xff] %v819
        %852 = vst [vmem:[#allocation2 + $0xf0] sm:$0xff] %v820
        %853 = vst [vmem:[#allocation2 + $0xf8] sm:$0xff] %v821
        %v854 = vld [vmem:[#allocation2] sm:$0xff]
        %v855 = vld [vmem:[#allocation2 + $0x8] sm:$0xff]
        %v856 = vld [vmem:[#allocation2 + $0x10] sm:$0xff]
        %v857 = vld [vmem:[#allocation2 + $0x18] sm:$0xff]
        %v858 = vld [vmem:[#allocation2 + $0x20] sm:$0xff]
        %v859 = vld [vmem:[#allocation2 + $0x28] sm:$0xff]
        %v860 = vld [vmem:[#allocation2 + $0x30] sm:$0xff]
        %v861 = vld [vmem:[#allocation2 + $0x38] sm:$0xff]
        %v862 = vld [vmem:[#allocation2 + $0x40] sm:$0xff]
        %v863 = vld [vmem:[#allocation2 + $0x48] sm:$0xff]
        %v864 = vld [vmem:[#allocation2 + $0x50] sm:$0xff]
        %v865 = vld [vmem:[#allocation2 + $0x58] sm:$0xff]
        %v866 = vld [vmem:[#allocation2 + $0x60] sm:$0xff]
        %v867 = vld [vmem:[#allocation2 + $0x68] sm:$0xff]
        %v868 = vld [vmem:[#allocation2 + $0x70] sm:$0xff]
        %v869 = vld [vmem:[#allocation2 + $0x78] sm:$0xff]
        %v870 = vld [vmem:[#allocation2 + $0x80] sm:$0xff]
        %v871 = vld [vmem:[#allocation2 + $0x88] sm:$0xff]
        %v872 = vld [vmem:[#allocation2 + $0x90] sm:$0xff]
        %v873 = vld [vmem:[#allocation2 + $0x98] sm:$0xff]
        %v874 = vld [vmem:[#allocation2 + $0xa0] sm:$0xff]
        %v875 = vld [vmem:[#allocation2 + $0xa8] sm:$0xff]
        %v876 = vld [vmem:[#allocation2 + $0xb0] sm:$0xff]
        %v877 = vld [vmem:[#allocation2 + $0xb8] sm:$0xff]
        %v878 = vld [vmem:[#allocation2 + $0xc0] sm:$0xff]
        %v879 = vld [vmem:[#allocation2 + $0xc8] sm:$0xff]
        %v880 = vld [vmem:[#allocation2 + $0xd0] sm:$0xff]
        %v881 = vld [vmem:[#allocation2 + $0xd8] sm:$0xff]
        %v882 = vld [vmem:[#allocation2 + $0xe0] sm:$0xff]
        %v883 = vld [vmem:[#allocation2 + $0xe8] sm:$0xff]
        %v884 = vld [vmem:[#allocation2 + $0xf0] sm:$0xff]
        %v885 = vld [vmem:[#allocation2 + $0xf8] sm:$0xff]
        %v886 = vld [vmem:[%s229 + $0x20] sm:$0xff]
        %v887 = vld [vmem:[%s229 + $0x28] sm:$0xff]
        %v888 = vld [vmem:[%s229 + $0x30] sm:$0xff]
        %v889 = vld [vmem:[%s229 + $0x38] sm:$0xff]
        %v890 = vld [vmem:[%s229 + $0x40] sm:$0xff]
        %v891 = vld [vmem:[%s229 + $0x48] sm:$0xff]
        %v892 = vld [vmem:[%s229 + $0x50] sm:$0xff]
        %v893 = vld [vmem:[%s229 + $0x58] sm:$0xff]
        %v894 = vld [vmem:[%s229 + $0x60] sm:$0xff]
        %v895 = vld [vmem:[%s229 + $0x68] sm:$0xff]
        %v896 = vld [vmem:[%s229 + $0x70] sm:$0xff]
        %v897 = vld [vmem:[%s229 + $0x78] sm:$0xff]
        %v898 = vld [vmem:[%s229 + $0x80] sm:$0xff]
        %v899 = vld [vmem:[%s229 + $0x88] sm:$0xff]
        %v900 = vld [vmem:[%s229 + $0x90] sm:$0xff]
        %v901 = vld [vmem:[%s229 + $0x98] sm:$0xff]
        %v902 = vld [vmem:[%s229 + $0xa0] sm:$0xff]
        %v903 = vld [vmem:[%s229 + $0xa8] sm:$0xff]
        %v904 = vld [vmem:[%s229 + $0xb0] sm:$0xff]
        %v905 = vld [vmem:[%s229 + $0xb8] sm:$0xff]
        %v906 = vld [vmem:[%s229 + $0xc0] sm:$0xff]
        %v907 = vld [vmem:[%s229 + $0xc8] sm:$0xff]
        %v908 = vld [vmem:[%s229 + $0xd0] sm:$0xff]
        %v909 = vld [vmem:[%s229 + $0xd8] sm:$0xff]
        %v910 = vld [vmem:[%s229 + $0xe0] sm:$0xff]
        %v911 = vld [vmem:[%s229 + $0xe8] sm:$0xff]
        %v912 = vld [vmem:[%s229 + $0xf0] sm:$0xff]
        %v913 = vld [vmem:[%s229 + $0xf8] sm:$0xff]
        %v914 = vld [vmem:[%s229 + $0x100] sm:$0xff]
        %v915 = vld [vmem:[%s229 + $0x108] sm:$0xff]
        %v916 = vld [vmem:[%s229 + $0x110] sm:$0xff]
        %v917 = vld [vmem:[%s229 + $0x118] sm:$0xff]
        %s918 = scalar_lea.vmem %s233, 32
        %v919 = vld [vmem:[%s918] sm:$0xff]
        %v920 = vld [vmem:[%s918 + $0x8] sm:$0xff]
        %v922 = vsel %vm272, %v886, 0
        %v925 = vsel %vm272, %v887, 0
        %v928 = vsel %vm272, %v888, 0
        %v931 = vsel %vm272, %v889, 0
        %v934 = vsel %vm272, %v890, 0
        %v937 = vsel %vm272, %v891, 0
        %v940 = vsel %vm272, %v892, 0
        %v943 = vsel %vm272, %v893, 0
        %v946 = vsel %vm272, %v894, 0
        %v949 = vsel %vm272, %v895, 0
        %v952 = vsel %vm272, %v896, 0
        %v955 = vsel %vm272, %v897, 0
        %v958 = vsel %vm272, %v898, 0
        %v961 = vsel %vm272, %v899, 0
        %v964 = vsel %vm272, %v900, 0
        %v967 = vsel %vm272, %v901, 0
        %v970 = vsel %vm272, %v902, 0
        %v973 = vsel %vm272, %v903, 0
        %v976 = vsel %vm272, %v904, 0
        %v979 = vsel %vm272, %v905, 0
        %v982 = vsel %vm272, %v906, 0
        %v985 = vsel %vm272, %v907, 0
        %v988 = vsel %vm272, %v908, 0
        %v991 = vsel %vm272, %v909, 0
        %v994 = vsel %vm272, %v910, 0
        %v997 = vsel %vm272, %v911, 0
        %v1000 = vsel %vm272, %v912, 0
        %v1003 = vsel %vm272, %v913, 0
        %v1006 = vsel %vm272, %v914, 0
        %v1009 = vsel %vm272, %v915, 0
        %v1012 = vsel %vm272, %v916, 0
        %v1015 = vsel %vm272, %v917, 0
        %1017 = vmatpush.msra.mxu0 0.0
        %1018 = vmatpush.msra.mxu0 0.0
        %1019 = vmatpush.msra.mxu0 0.0
        %1020 = vmatpush.msra.mxu0 0.0
        %1021 = vmatpush.msra.mxu0 0.0
        %1022 = vmatpush.msra.mxu0 0.0
        %1023 = vmatpush.msra.mxu0 0.0
        %1024 = vmatpush.msra.mxu0 0.0
        %1025 = vmatpush.msra.mxu0 0.0
        %1026 = vmatpush.msra.mxu0 0.0
        %1027 = vmatpush.msra.mxu0 0.0
        %1028 = vmatpush.msra.mxu0 0.0
        %1029 = vmatpush.msra.mxu0 0.0
        %1030 = vmatpush.msra.mxu0 0.0
        %1031 = vmatpush.msra.mxu0 %v920
        %1032 = vmatpush.msra.mxu0 %v919
        %1033 = vmatmul.f32.gmra.mxu0 %v922
        %v1034 = vpop.f32.mrf.mxu0
        %v1035 = vadd.f32 0.0, %v1034
        %1036 = vmatmul.f32.gmra.mxu0 %v925
        %v1037 = vpop.f32.mrf.mxu0
        %v1038 = vadd.f32 0.0, %v1037
        %1039 = vmatmul.f32.gmra.mxu0 %v928
        %v1040 = vpop.f32.mrf.mxu0
        %v1041 = vadd.f32 0.0, %v1040
        %1042 = vmatmul.f32.gmra.mxu0 %v931
        %v1043 = vpop.f32.mrf.mxu0
        %v1044 = vadd.f32 0.0, %v1043
        %1045 = vmatmul.f32.gmra.mxu0 %v934
        %v1046 = vpop.f32.mrf.mxu0
        %v1047 = vadd.f32 0.0, %v1046
        %1048 = vmatmul.f32.gmra.mxu0 %v937
        %v1049 = vpop.f32.mrf.mxu0
        %v1050 = vadd.f32 0.0, %v1049
        %1051 = vmatmul.f32.gmra.mxu0 %v940
        %v1052 = vpop.f32.mrf.mxu0
        %v1053 = vadd.f32 0.0, %v1052
        %1054 = vmatmul.f32.gmra.mxu0 %v943
        %v1055 = vpop.f32.mrf.mxu0
        %v1056 = vadd.f32 0.0, %v1055
        %1057 = vmatmul.f32.gmra.mxu0 %v946
        %v1058 = vpop.f32.mrf.mxu0
        %v1059 = vadd.f32 0.0, %v1058
        %1060 = vmatmul.f32.gmra.mxu0 %v949
        %v1061 = vpop.f32.mrf.mxu0
        %v1062 = vadd.f32 0.0, %v1061
        %1063 = vmatmul.f32.gmra.mxu0 %v952
        %v1064 = vpop.f32.mrf.mxu0
        %v1065 = vadd.f32 0.0, %v1064
        %1066 = vmatmul.f32.gmra.mxu0 %v955
        %v1067 = vpop.f32.mrf.mxu0
        %v1068 = vadd.f32 0.0, %v1067
        %1069 = vmatmul.f32.gmra.mxu0 %v958
        %v1070 = vpop.f32.mrf.mxu0
        %v1071 = vadd.f32 0.0, %v1070
        %1072 = vmatmul.f32.gmra.mxu0 %v961
        %v1073 = vpop.f32.mrf.mxu0
        %v1074 = vadd.f32 0.0, %v1073
        %1075 = vmatmul.f32.gmra.mxu0 %v964
        %v1076 = vpop.f32.mrf.mxu0
        %v1077 = vadd.f32 0.0, %v1076
        %1078 = vmatmul.f32.gmra.mxu0 %v967
        %v1079 = vpop.f32.mrf.mxu0
        %v1080 = vadd.f32 0.0, %v1079
        %1081 = vmatmul.f32.gmra.mxu0 %v970
        %v1082 = vpop.f32.mrf.mxu0
        %v1083 = vadd.f32 0.0, %v1082
        %1084 = vmatmul.f32.gmra.mxu0 %v973
        %v1085 = vpop.f32.mrf.mxu0
        %v1086 = vadd.f32 0.0, %v1085
        %1087 = vmatmul.f32.gmra.mxu0 %v976
        %v1088 = vpop.f32.mrf.mxu0
        %v1089 = vadd.f32 0.0, %v1088
        %1090 = vmatmul.f32.gmra.mxu0 %v979
        %v1091 = vpop.f32.mrf.mxu0
        %v1092 = vadd.f32 0.0, %v1091
        %1093 = vmatmul.f32.gmra.mxu0 %v982
        %v1094 = vpop.f32.mrf.mxu0
        %v1095 = vadd.f32 0.0, %v1094
        %1096 = vmatmul.f32.gmra.mxu0 %v985
        %v1097 = vpop.f32.mrf.mxu0
        %v1098 = vadd.f32 0.0, %v1097
        %1099 = vmatmul.f32.gmra.mxu0 %v988
        %v1100 = vpop.f32.mrf.mxu0
        %v1101 = vadd.f32 0.0, %v1100
        %1102 = vmatmul.f32.gmra.mxu0 %v991
        %v1103 = vpop.f32.mrf.mxu0
        %v1104 = vadd.f32 0.0, %v1103
        %1105 = vmatmul.f32.gmra.mxu0 %v994
        %v1106 = vpop.f32.mrf.mxu0
        %v1107 = vadd.f32 0.0, %v1106
        %1108 = vmatmul.f32.gmra.mxu0 %v997
        %v1109 = vpop.f32.mrf.mxu0
        %v1110 = vadd.f32 0.0, %v1109
        %1111 = vmatmul.f32.gmra.mxu0 %v1000
        %v1112 = vpop.f32.mrf.mxu0
        %v1113 = vadd.f32 0.0, %v1112
        %1114 = vmatmul.f32.gmra.mxu0 %v1003
        %v1115 = vpop.f32.mrf.mxu0
        %v1116 = vadd.f32 0.0, %v1115
        %1117 = vmatmul.f32.gmra.mxu0 %v1006
        %v1118 = vpop.f32.mrf.mxu0
        %v1119 = vadd.f32 0.0, %v1118
        %1120 = vmatmul.f32.gmra.mxu0 %v1009
        %v1121 = vpop.f32.mrf.mxu0
        %v1122 = vadd.f32 0.0, %v1121
        %1123 = vmatmul.f32.gmra.mxu0 %v1012
        %v1124 = vpop.f32.mrf.mxu0
        %v1125 = vadd.f32 0.0, %v1124
        %1126 = vmatmul.f32.gmra.mxu0 %v1015
        %v1127 = vpop.f32.mrf.mxu0
        %v1128 = vadd.f32 0.0, %v1127
        %1129 = vdwg.mxu0
        %v1130 = vadd.f32 %v854, %v1035
        %v1131 = vadd.f32 %v855, %v1038
        %v1132 = vadd.f32 %v856, %v1041
        %v1133 = vadd.f32 %v857, %v1044
        %v1134 = vadd.f32 %v858, %v1047
        %v1135 = vadd.f32 %v859, %v1050
        %v1136 = vadd.f32 %v860, %v1053
        %v1137 = vadd.f32 %v861, %v1056
        %v1138 = vadd.f32 %v862, %v1059
        %v1139 = vadd.f32 %v863, %v1062
        %v1140 = vadd.f32 %v864, %v1065
        %v1141 = vadd.f32 %v865, %v1068
        %v1142 = vadd.f32 %v866, %v1071
        %v1143 = vadd.f32 %v867, %v1074
        %v1144 = vadd.f32 %v868, %v1077
        %v1145 = vadd.f32 %v869, %v1080
        %v1146 = vadd.f32 %v870, %v1083
        %v1147 = vadd.f32 %v871, %v1086
        %v1148 = vadd.f32 %v872, %v1089
        %v1149 = vadd.f32 %v873, %v1092
        %v1150 = vadd.f32 %v874, %v1095
        %v1151 = vadd.f32 %v875, %v1098
        %v1152 = vadd.f32 %v876, %v1101
        %v1153 = vadd.f32 %v877, %v1104
        %v1154 = vadd.f32 %v878, %v1107
        %v1155 = vadd.f32 %v879, %v1110
        %v1156 = vadd.f32 %v880, %v1113
        %v1157 = vadd.f32 %v881, %v1116
        %v1158 = vadd.f32 %v882, %v1119
        %v1159 = vadd.f32 %v883, %v1122
        %v1160 = vadd.f32 %v884, %v1125
        %v1161 = vadd.f32 %v885, %v1128
        %1162 = vst [vmem:[#allocation2] sm:$0xff] %v1130
        %1163 = vst [vmem:[#allocation2 + $0x8] sm:$0xff] %v1131
        %1164 = vst [vmem:[#allocation2 + $0x10] sm:$0xff] %v1132
        %1165 = vst [vmem:[#allocation2 + $0x18] sm:$0xff] %v1133
        %1166 = vst [vmem:[#allocation2 + $0x20] sm:$0xff] %v1134
        %1167 = vst [vmem:[#allocation2 + $0x28] sm:$0xff] %v1135
        %1168 = vst [vmem:[#allocation2 + $0x30] sm:$0xff] %v1136
        %1169 = vst [vmem:[#allocation2 + $0x38] sm:$0xff] %v1137
        %1170 = vst [vmem:[#allocation2 + $0x40] sm:$0xff] %v1138
        %1171 = vst [vmem:[#allocation2 + $0x48] sm:$0xff] %v1139
        %1172 = vst [vmem:[#allocation2 + $0x50] sm:$0xff] %v1140
        %1173 = vst [vmem:[#allocation2 + $0x58] sm:$0xff] %v1141
        %1174 = vst [vmem:[#allocation2 + $0x60] sm:$0xff] %v1142
        %1175 = vst [vmem:[#allocation2 + $0x68] sm:$0xff] %v1143
        %1176 = vst [vmem:[#allocation2 + $0x70] sm:$0xff] %v1144
        %1177 = vst [vmem:[#allocation2 + $0x78] sm:$0xff] %v1145
        %1178 = vst [vmem:[#allocation2 + $0x80] sm:$0xff] %v1146
        %1179 = vst [vmem:[#allocation2 + $0x88] sm:$0xff] %v1147
        %1180 = vst [vmem:[#allocation2 + $0x90] sm:$0xff] %v1148
        %1181 = vst [vmem:[#allocation2 + $0x98] sm:$0xff] %v1149
        %1182 = vst [vmem:[#allocation2 + $0xa0] sm:$0xff] %v1150
        %1183 = vst [vmem:[#allocation2 + $0xa8] sm:$0xff] %v1151
        %1184 = vst [vmem:[#allocation2 + $0xb0] sm:$0xff] %v1152
        %1185 = vst [vmem:[#allocation2 + $0xb8] sm:$0xff] %v1153
        %1186 = vst [vmem:[#allocation2 + $0xc0] sm:$0xff] %v1154
        %1187 = vst [vmem:[#allocation2 + $0xc8] sm:$0xff] %v1155
        %1188 = vst [vmem:[#allocation2 + $0xd0] sm:$0xff] %v1156
        %1189 = vst [vmem:[#allocation2 + $0xd8] sm:$0xff] %v1157
        %1190 = vst [vmem:[#allocation2 + $0xe0] sm:$0xff] %v1158
        %1191 = vst [vmem:[#allocation2 + $0xe8] sm:$0xff] %v1159
        %1192 = vst [vmem:[#allocation2 + $0xf0] sm:$0xff] %v1160
        %1193 = vst [vmem:[#allocation2 + $0xf8] sm:$0xff] %v1161
        %v1194 = vld [vmem:[#allocation2] sm:$0xff]
        %v1195 = vld [vmem:[#allocation2 + $0x8] sm:$0xff]
        %v1196 = vld [vmem:[#allocation2 + $0x10] sm:$0xff]
        %v1197 = vld [vmem:[#allocation2 + $0x18] sm:$0xff]
        %v1198 = vld [vmem:[#allocation2 + $0x20] sm:$0xff]
        %v1199 = vld [vmem:[#allocation2 + $0x28] sm:$0xff]
        %v1200 = vld [vmem:[#allocation2 + $0x30] sm:$0xff]
        %v1201 = vld [vmem:[#allocation2 + $0x38] sm:$0xff]
        %v1202 = vld [vmem:[#allocation2 + $0x40] sm:$0xff]
        %v1203 = vld [vmem:[#allocation2 + $0x48] sm:$0xff]
        %v1204 = vld [vmem:[#allocation2 + $0x50] sm:$0xff]
        %v1205 = vld [vmem:[#allocation2 + $0x58] sm:$0xff]
        %v1206 = vld [vmem:[#allocation2 + $0x60] sm:$0xff]
        %v1207 = vld [vmem:[#allocation2 + $0x68] sm:$0xff]
        %v1208 = vld [vmem:[#allocation2 + $0x70] sm:$0xff]
        %v1209 = vld [vmem:[#allocation2 + $0x78] sm:$0xff]
        %v1210 = vld [vmem:[#allocation2 + $0x80] sm:$0xff]
        %v1211 = vld [vmem:[#allocation2 + $0x88] sm:$0xff]
        %v1212 = vld [vmem:[#allocation2 + $0x90] sm:$0xff]
        %v1213 = vld [vmem:[#allocation2 + $0x98] sm:$0xff]
        %v1214 = vld [vmem:[#allocation2 + $0xa0] sm:$0xff]
        %v1215 = vld [vmem:[#allocation2 + $0xa8] sm:$0xff]
        %v1216 = vld [vmem:[#allocation2 + $0xb0] sm:$0xff]
        %v1217 = vld [vmem:[#allocation2 + $0xb8] sm:$0xff]
        %v1218 = vld [vmem:[#allocation2 + $0xc0] sm:$0xff]
        %v1219 = vld [vmem:[#allocation2 + $0xc8] sm:$0xff]
        %v1220 = vld [vmem:[#allocation2 + $0xd0] sm:$0xff]
        %v1221 = vld [vmem:[#allocation2 + $0xd8] sm:$0xff]
        %v1222 = vld [vmem:[#allocation2 + $0xe0] sm:$0xff]
        %v1223 = vld [vmem:[#allocation2 + $0xe8] sm:$0xff]
        %v1224 = vld [vmem:[#allocation2 + $0xf0] sm:$0xff]
        %v1225 = vld [vmem:[#allocation2 + $0xf8] sm:$0xff]
        %v1226 = vld [vmem:[%s236] sm:$0x1]
        %v1228 = vperm.slane %v1226, 0
        %v1230 = vadd.f32 %v1194, %v1228
        %v1231 = vadd.f32 %v1195, %v1228
        %v1232 = vadd.f32 %v1196, %v1228
        %v1233 = vadd.f32 %v1197, %v1228
        %v1234 = vadd.f32 %v1198, %v1228
        %v1235 = vadd.f32 %v1199, %v1228
        %v1236 = vadd.f32 %v1200, %v1228
        %v1237 = vadd.f32 %v1201, %v1228
        %v1238 = vadd.f32 %v1202, %v1228
        %v1239 = vadd.f32 %v1203, %v1228
        %v1240 = vadd.f32 %v1204, %v1228
        %v1241 = vadd.f32 %v1205, %v1228
        %v1242 = vadd.f32 %v1206, %v1228
        %v1243 = vadd.f32 %v1207, %v1228
        %v1244 = vadd.f32 %v1208, %v1228
        %v1245 = vadd.f32 %v1209, %v1228
        %v1246 = vadd.f32 %v1210, %v1228
        %v1247 = vadd.f32 %v1211, %v1228
        %v1248 = vadd.f32 %v1212, %v1228
        %v1249 = vadd.f32 %v1213, %v1228
        %v1250 = vadd.f32 %v1214, %v1228
        %v1251 = vadd.f32 %v1215, %v1228
        %v1252 = vadd.f32 %v1216, %v1228
        %v1253 = vadd.f32 %v1217, %v1228
        %v1254 = vadd.f32 %v1218, %v1228
        %v1255 = vadd.f32 %v1219, %v1228
        %v1256 = vadd.f32 %v1220, %v1228
        %v1257 = vadd.f32 %v1221, %v1228
        %v1258 = vadd.f32 %v1222, %v1228
        %v1259 = vadd.f32 %v1223, %v1228
        %v1260 = vadd.f32 %v1224, %v1228
        %v1261 = vadd.f32 %v1225, %v1228
        %v1262 = vmax.f32 %v1230, 0.0
        %v1263 = vmax.f32 %v1231, 0.0
        %v1264 = vmax.f32 %v1232, 0.0
        %v1265 = vmax.f32 %v1233, 0.0
        %v1266 = vmax.f32 %v1234, 0.0
        %v1267 = vmax.f32 %v1235, 0.0
        %v1268 = vmax.f32 %v1236, 0.0
        %v1269 = vmax.f32 %v1237, 0.0
        %v1270 = vmax.f32 %v1238, 0.0
        %v1271 = vmax.f32 %v1239, 0.0
        %v1272 = vmax.f32 %v1240, 0.0
        %v1273 = vmax.f32 %v1241, 0.0
        %v1274 = vmax.f32 %v1242, 0.0
        %v1275 = vmax.f32 %v1243, 0.0
        %v1276 = vmax.f32 %v1244, 0.0
        %v1277 = vmax.f32 %v1245, 0.0
        %v1278 = vmax.f32 %v1246, 0.0
        %v1279 = vmax.f32 %v1247, 0.0
        %v1280 = vmax.f32 %v1248, 0.0
        %v1281 = vmax.f32 %v1249, 0.0
        %v1282 = vmax.f32 %v1250, 0.0
        %v1283 = vmax.f32 %v1251, 0.0
        %v1284 = vmax.f32 %v1252, 0.0
        %v1285 = vmax.f32 %v1253, 0.0
        %v1286 = vmax.f32 %v1254, 0.0
        %v1287 = vmax.f32 %v1255, 0.0
        %v1288 = vmax.f32 %v1256, 0.0
        %v1289 = vmax.f32 %v1257, 0.0
        %v1290 = vmax.f32 %v1258, 0.0
        %v1291 = vmax.f32 %v1259, 0.0
        %v1292 = vmax.f32 %v1260, 0.0
        %v1293 = vmax.f32 %v1261, 0.0
        %1294 = vst [vmem:[%s220] sm:$0xff] %v1262
        %1295 = vst [vmem:[%s220 + $0x8] sm:$0xff] %v1263
        %1296 = vst [vmem:[%s220 + $0x10] sm:$0xff] %v1264
        %1297 = vst [vmem:[%s220 + $0x18] sm:$0xff] %v1265
        %1298 = vst [vmem:[%s220 + $0x20] sm:$0xff] %v1266
        %1299 = vst [vmem:[%s220 + $0x28] sm:$0xff] %v1267
        %1300 = vst [vmem:[%s220 + $0x30] sm:$0xff] %v1268
        %1301 = vst [vmem:[%s220 + $0x38] sm:$0xff] %v1269
        %1302 = vst [vmem:[%s220 + $0x40] sm:$0xff] %v1270
        %1303 = vst [vmem:[%s220 + $0x48] sm:$0xff] %v1271
        %1304 = vst [vmem:[%s220 + $0x50] sm:$0xff] %v1272
        %1305 = vst [vmem:[%s220 + $0x58] sm:$0xff] %v1273
        %1306 = vst [vmem:[%s220 + $0x60] sm:$0xff] %v1274
        %1307 = vst [vmem:[%s220 + $0x68] sm:$0xff] %v1275
        %1308 = vst [vmem:[%s220 + $0x70] sm:$0xff] %v1276
        %1309 = vst [vmem:[%s220 + $0x78] sm:$0xff] %v1277
        %1310 = vst [vmem:[%s220 + $0x80] sm:$0xff] %v1278
        %1311 = vst [vmem:[%s220 + $0x88] sm:$0xff] %v1279
        %1312 = vst [vmem:[%s220 + $0x90] sm:$0xff] %v1280
        %1313 = vst [vmem:[%s220 + $0x98] sm:$0xff] %v1281
        %1314 = vst [vmem:[%s220 + $0xa0] sm:$0xff] %v1282
        %1315 = vst [vmem:[%s220 + $0xa8] sm:$0xff] %v1283
        %1316 = vst [vmem:[%s220 + $0xb0] sm:$0xff] %v1284
        %1317 = vst [vmem:[%s220 + $0xb8] sm:$0xff] %v1285
        %1318 = vst [vmem:[%s220 + $0xc0] sm:$0xff] %v1286
        %1319 = vst [vmem:[%s220 + $0xc8] sm:$0xff] %v1287
        %1320 = vst [vmem:[%s220 + $0xd0] sm:$0xff] %v1288
        %1321 = vst [vmem:[%s220 + $0xd8] sm:$0xff] %v1289
        %1322 = vst [vmem:[%s220 + $0xe0] sm:$0xff] %v1290
        %1323 = vst [vmem:[%s220 + $0xe8] sm:$0xff] %v1291
        %1324 = vst [vmem:[%s220 + $0xf0] sm:$0xff] %v1292
        %1325 = vst [vmem:[%s220 + $0xf8] sm:$0xff] %v1293
        %s1326 = sand.u32 %s128, 1
        %s1327 = scalar_lea.sflag [#allocation4], %s1326
        %s1328 = sand.u32 %s128, 1
        %s1329 = smul.addr %s1328, 256
        %s1330 = scalar_lea.vmem [#allocation3], %s1329
        // Predicated region
        $region33: #{tpu_custom_call.1} parent=31 // pred_check
          %p1331 = pneg %p138
        $region34: #{tpu_custom_call.1} parent=31 // pred_check_branch
          %1333 = sbr.rel (%p1331) target = $region36
        $region35: #{tpu_custom_call.1} parent=31 // pred_region
          %s1334 = smul.u32 32, %s24
          %1336 = vsyncadd %s1327, 0
          %s1337 = sadd.s32 %s23, %s1334
          %s1338 = smul.addr %s22, 32
          %s1339 = sadd.s32 %s1337, %s1338
          %s1340 = smul.addr %s1339, 8
          %s1341 = scalar_lea.hbm %s3, %s1340
          %s1342 = sshll.u32 %s1330, 4
          %s1343 = int_to_ptr.vmem [resolvable:$true] %s1342
          %s1344 = sshll.u32 %s1341, 4
          %s1345 = int_to_ptr.hbm [resolvable:$true] %s1344
          %1350 = dma.vmem_to_hbm [thread:$0]  %s1343, 4096, %s1345, %s1327, 128, 128, 8
        $region36: #{tpu_custom_call.1} parent=31 // pred_fallthru
          _
      $region32: #{tpu_custom_call.1} parent=5 // pred_fallthru
        _
      %p1351 = scmp.le.s32.totalorder 2, %s12
      // Predicated region
      $region37: #{tpu_custom_call.1} parent=5 // pred_check
        %p1352 = pneg %p1351
      $region38: #{tpu_custom_call.1} parent=5 // pred_check_branch
        %1354 = sbr.rel (%p1352) target = $region40
      $region39: #{tpu_custom_call.1} parent=5 // pred_region
        %s1355 = ssub.s32 %s12, 2
        // Predicated region
        $region41: #{tpu_custom_call.1} parent=39 // pred_check
          %p1356 = pneg %p144
        $region42: #{tpu_custom_call.1} parent=39 // pred_check_branch
          %1358 = sbr.rel (%p1356) target = $region44
        $region43: #{tpu_custom_call.1} parent=39 // pred_region
          %s1359 = sand.u32 %s129, 1
          %s1360 = scalar_lea.sflag [#allocation4], %s1359
          %s1361 = sand.u32 %s129, 1
          %s1362 = smul.addr %s1361, 256
          %s1363 = scalar_lea.vmem [#allocation3], %s1362
          %1365 = dma.done %s1360, 4096
        $region44: #{tpu_custom_call.1} parent=39 // pred_fallthru
          _
      $region40: #{tpu_custom_call.1} parent=5 // pred_fallthru
        _
    $region6: #{tpu_custom_call.1} parent=1 // loop_footer
      %s16 = sadd.s32 1, %s12
    $region7: #{tpu_custom_call.1} parent=1 // loop_footer_branch
      %11 = sbr.rel target = $region3
    $region8: #{tpu_custom_call.1} parent=1 // loop_exit
      _
    %1366 = vsyncpa [#allocation4], 1
    %s1367 = scalar_lea.sflag [#allocation4], 1
    %1368 = vsyncpa %s1367, 1

</llo_original>
